<compile_context>
chip_gen: v7x
topology: tpu7x:2x2x1
jax: 0.10.0
libtpu: 0.0.40
codegen_flags: <defaults>
</compile_context>

<pallas_src>
import functools

import jax
import jax.numpy as jnp
from jax import lax
from jax.experimental import pallas as pl
from jax.experimental.pallas import tpu as pltpu


def _distance_kernel(sup_ref, qry_ref, out_ref, *, way, shot, feat):
    # sup_ref: (B, way*shot, F) -- row r = w*shot + s (free reshape of the
    #          original (B, way, shot, F) layout; no HBM transpose).
    # qry_ref: (B, Q, F)
    # out_ref: (B, Q, way)
    sup = sup_ref[...]                       # native dtype
    qry = qry_ref[...]                       # native dtype
    bsz = sup.shape[0]
    ws = way * shot

    # 0/1 selection matrix sel[w, r] = 1 iff row r belongs to class w
    # (r in [w*shot, (w+1)*shot)).  Built from iotas -- no integer division.
    w_idx = lax.broadcasted_iota(jnp.int32, (way, ws), 0)
    r_idx = lax.broadcasted_iota(jnp.int32, (way, ws), 1)
    lo = w_idx * shot
    mask = jnp.logical_and(r_idx >= lo, r_idx < lo + shot)
    sel = jnp.where(mask, 1.0, 0.0).astype(sup.dtype)
    sel_b = jnp.broadcast_to(sel, (bsz, way, ws))

    # proto_sum[b, w, f] = sum_s support[b, w, s, f]   (MXU, f32 accumulation)
    proto_f32 = lax.dot_general(
        sel_b, sup,
        dimension_numbers=(((2,), (1,)), ((0,), (0,))),
        preferred_element_type=jnp.float32)              # (B, way, F) f32

    # pq[b, q, w] = sum_f qry[b, q, f] * proto_sum[b, w, f]   (MXU, f32 acc)
    proto_nat = proto_f32.astype(qry.dtype)
    pq = lax.dot_general(
        qry, proto_nat,
        dimension_numbers=(((2,), (2,)), ((0,), (0,))),
        preferred_element_type=jnp.float32)              # (B, Q, way) f32

    # p2[b, 0, w] = ||proto_sum[b, w, :]||^2, produced directly in the
    # (B, 1, way) broadcast layout via a ones-row matvec (no transposes).
    proto_sq = proto_f32 * proto_f32
    ones_row = jnp.ones((bsz, 1, feat), jnp.float32)
    p2 = lax.dot_general(
        ones_row, proto_sq,
        dimension_numbers=(((2,), (2,)), ((0,), (0,))),
        preferred_element_type=jnp.float32)              # (B, 1, way) f32

    # sim = mean_f -(proto - q)^2 with the q^2 term dropped (it cancels after
    # the per-query max subtraction).  proto = proto_sum / shot, so:
    #   sim = 2/(F*shot) * pq - 1/(F*shot^2) * p2   (+ per-q const, dropped)
    inv = 1.0 / (float(feat) * float(shot))
    sim = pq * (2.0 * inv) - p2 * (inv / float(shot))    # (B, Q, way)

    # Subtract the per-query max over `way` (lane-axis reduce).
    sim = sim - jnp.max(sim, axis=-1, keepdims=True)

    out_ref[...] = sim.astype(out_ref.dtype)


def _tpu_vmem_capacity_bytes():
    try:
        return int(pltpu.get_tpu_info().vmem_capacity_bytes)
    except Exception:
        return 64 << 20          # conservative fallback (v7x per-TC VMEM)


def _choose_batch_tile(bs, per_batch_bytes, budget_bytes, prefer_even_grid):
    """Largest batch tile fitting the VMEM budget, generation-aware."""
    max_fit = max(1, min(bs, budget_bytes // max(per_batch_bytes, 1)))
    if prefer_even_grid and bs >= 2:
        # v7x: 2 TensorCores -> prefer an even number of equal "parallel"
        # steps, with minimal padding, then the largest tile.
        best = None
        for t in range(max_fit, 0, -1):
            steps = -(-bs // t)
            if steps < 2 or steps % 2 != 0:
                continue
            pad = steps * t - bs
            key = (pad, -t)
            if best is None or key < best[0]:
                best = (key, t)
        if best is not None:
            return best[1]
    # v5e / v6e (single TC): fewest sequential steps; avoid padding if an
    # exact divisor fits.
    for t in range(max_fit, 0, -1):
        if bs % t == 0:
            return t
    return max_fit


def distance_network(support_features, query_features):
    """support_features: (bs, way, shot, F); query_features: (bs, Q, F)."""
    bs, way, shot, feat = support_features.shape
    bs_q, q_num, feat_q = query_features.shape
    assert bs == bs_q and feat == feat_q

    # Free reshape: collapsing adjacent contiguous dims is a bitcast (no copy).
    ws = way * shot
    sup2 = support_features.reshape(bs, ws, feat)
    out_dtype = query_features.dtype

    in_item = jnp.dtype(support_features.dtype).itemsize
    out_item = jnp.dtype(out_dtype).itemsize

    # Per-batch footprint: double-buffered inputs/output plus the in-kernel
    # f32 intermediates (proto, proto^2, pq/sim, selection matrix, ones row).
    io_bytes = (ws * feat + q_num * feat) * in_item + q_num * way * out_item
    interm_bytes = (3 * way * feat + 3 * q_num * way + way * ws + feat) * 4
    per_batch = 2 * io_bytes + interm_bytes

    vmem_cap = _tpu_vmem_capacity_bytes()
    budget = int(0.40 * vmem_cap)
    vmem_limit = min(int(0.80 * vmem_cap), 100 * 1024 * 1024)
    prefer_even_grid = vmem_cap < (96 << 20)     # v7x proxy: 64 MiB VMEM, 2 TCs

    b_tile = _choose_batch_tile(bs, per_batch, budget, prefer_even_grid)
    steps = -(-bs // b_tile)
    padded_bs = steps * b_tile
    if padded_bs != bs:
        pad = padded_bs - bs
        sup2 = jnp.pad(sup2, ((0, pad), (0, 0), (0, 0)))
        qry = jnp.pad(query_features, ((0, pad), (0, 0), (0, 0)))
    else:
        qry = query_features

    kernel = functools.partial(_distance_kernel, way=way, shot=shot, feat=feat)

    cost = pl.CostEstimate(
        flops=(2 * bs * q_num * way * feat          # query . proto
               + 2 * bs * way * ws * feat           # shot-sum on the MXU
               + 2 * bs * way * feat),              # ||proto||^2
        transcendentals=0,
        bytes_accessed=((bs * ws * feat + bs * q_num * feat) * in_item
                        + bs * q_num * way * out_item))

    out = pl.pallas_call(
        kernel,
        out_shape=jax.ShapeDtypeStruct((padded_bs, q_num, way), out_dtype),
        grid_spec=pltpu.PrefetchScalarGridSpec(
            num_scalar_prefetch=0,
            grid=(steps,),
            in_specs=[
                pl.BlockSpec((b_tile, ws, feat), lambda b: (b, 0, 0)),
                pl.BlockSpec((b_tile, q_num, feat), lambda b: (b, 0, 0)),
            ],
            out_specs=pl.BlockSpec((b_tile, q_num, way), lambda b: (b, 0, 0)),
        ),
        compiler_params=pltpu.CompilerParams(
            dimension_semantics=("parallel",),
            vmem_limit_bytes=vmem_limit),
        cost_estimate=cost,
    )(sup2, qry)

    if padded_bs != bs:
        out = out[:bs]
    return out


def _reference(support_features, query_features):
    # Pure-JAX mirror of the PyTorch forward (direct diff formulation).
    proto = jnp.mean(support_features, axis=2)                    # (bs, way, F)
    diff = proto[:, None, :, :] - query_features[:, :, None, :]   # (bs, Q, way, F)
    sim = jnp.mean(-(diff ** 2), axis=-1)                         # (bs, Q, way)
    sim = sim - jnp.max(sim, axis=-1, keepdims=True)
    return sim


if __name__ == "__main__":
    key = jax.random.PRNGKey(0)
    k1, k2 = jax.random.split(key)

    bs, way, shot, feat = 4, 4, 2, 128
    query_num = 2
    q_total = query_num * way  # 8

    support = jax.random.normal(k1, (bs, way, shot, feat), dtype=jnp.float32)
    query = jax.random.normal(k2, (bs, q_total, feat), dtype=jnp.float32)

    out = distance_network(support, query)
    out = jax.block_until_ready(out)

    ref = _reference(support, query)
    assert out.shape == (bs, q_total, way)
    err = jnp.max(jnp.abs(out - ref))
    assert jnp.allclose(out, ref, atol=1e-4, rtol=1e-4), f"max abs err {err}"

    print("KERNEL_OK")
</pallas_src>

<mosaic_0001>
module attributes {stable_mosaic.version = 11 : i64} {
  func.func @_distance_kernel(%arg0: i32, %arg1: memref<2x8x128xf32, #tpu.memory_space<vmem>>, %arg2: memref<2x8x128xf32, #tpu.memory_space<vmem>>, %arg3: memref<2x8x4xf32, #tpu.memory_space<vmem>>) attributes {dimension_semantics = [#tpu.dimension_semantics<parallel>], iteration_bounds = array<i64: 2>, scalar_prefetch = 0 : i64, scratch_operands = 0 : i64, tpu.core_type = #tpu.core_type<tc>, window_params = [{transform_indices = @transform_0, window_bounds = array<i64: 2, 8, 128>}, {transform_indices = @transform_1, window_bounds = array<i64: 2, 8, 128>}, {transform_indices = @transform_2, window_bounds = array<i64: 2, 8, 4>}]} {
    %c0 = arith.constant 0 : index
    %c0_0 = arith.constant 0 : index
    %c0_1 = arith.constant 0 : index
    %0 = vector.load %arg1[%c0, %c0_0, %c0_1] : memref<2x8x128xf32, #tpu.memory_space<vmem>>, vector<2x8x128xf32>
    %c0_2 = arith.constant 0 : index
    %c0_3 = arith.constant 0 : index
    %c0_4 = arith.constant 0 : index
    %1 = vector.load %arg2[%c0_2, %c0_3, %c0_4] : memref<2x8x128xf32, #tpu.memory_space<vmem>>, vector<2x8x128xf32>
    %2 = tpu.iota {dimensions = array<i32: 0>} : vector<4x8xi32>
    %3 = tpu.iota {dimensions = array<i32: 1>} : vector<4x8xi32>
    %c2_i32 = arith.constant 2 : i32
    %4 = vector.broadcast %c2_i32 : i32 to vector<4x8xi32>
    %5 = arith.muli %2, %4 : vector<4x8xi32>
    %6 = arith.cmpi sge, %3, %5 : vector<4x8xi32>
    %c2_i32_5 = arith.constant 2 : i32
    %7 = vector.broadcast %c2_i32_5 : i32 to vector<4x8xi32>
    %8 = arith.addi %5, %7 : vector<4x8xi32>
    %9 = arith.cmpi slt, %3, %8 : vector<4x8xi32>
    %10 = arith.andi %6, %9 : vector<4x8xi1>
    %cst = arith.constant 1.000000e+00 : f32
    %cst_6 = arith.constant 0.000000e+00 : f32
    %11 = vector.broadcast %cst : f32 to vector<4x8xf32>
    %12 = vector.broadcast %cst_6 : f32 to vector<4x8xf32>
    %13 = arith.select %10, %11, %12 : vector<4x8xi1>, vector<4x8xf32>
    %14 = vector.shape_cast %13 : vector<4x8xf32> to vector<1x4x8xf32>
    %15 = vector.broadcast %14 : vector<1x4x8xf32> to vector<2x4x8xf32>
    %cst_7 = arith.constant dense<0.000000e+00> : vector<2x4x128xf32>
    %16 = tpu.matmul %15, %0, %cst_7 {dimension_numbers = #tpu.dot_dimension_numbers<[2], [1], [1], [2], [0, 0, 0, 1, 1, 2], [0], [0]>} : vector<2x4x8xf32>, vector<2x8x128xf32>, vector<2x4x128xf32> -> vector<2x4x128xf32>
    %cst_8 = arith.constant dense<0.000000e+00> : vector<2x8x4xf32>
    %17 = tpu.matmul %1, %16, %cst_8 {dimension_numbers = #tpu.dot_dimension_numbers<[2], [2], [1], [1], [0, 0, 0, 1, 1, 1], [0], [0]>} : vector<2x8x128xf32>, vector<2x4x128xf32>, vector<2x8x4xf32> -> vector<2x8x4xf32>
    %18 = arith.mulf %16, %16 : vector<2x4x128xf32>
    %cst_9 = arith.constant 1.000000e+00 : f32
    %19 = vector.broadcast %cst_9 : f32 to vector<2x1x128xf32>
    %cst_10 = arith.constant dense<0.000000e+00> : vector<2x1x4xf32>
    %20 = tpu.matmul %19, %18, %cst_10 {dimension_numbers = #tpu.dot_dimension_numbers<[2], [2], [1], [1], [0, 0, 0, 1, 1, 1], [0], [0]>} : vector<2x1x128xf32>, vector<2x4x128xf32>, vector<2x1x4xf32> -> vector<2x1x4xf32>
    %cst_11 = arith.constant 7.812500e-03 : f32
    %21 = vector.broadcast %cst_11 : f32 to vector<2x8x4xf32>
    %22 = arith.mulf %17, %21 : vector<2x8x4xf32>
    %cst_12 = arith.constant 0.001953125 : f32
    %23 = vector.broadcast %cst_12 : f32 to vector<2x1x4xf32>
    %24 = arith.mulf %20, %23 : vector<2x1x4xf32>
    %25 = vector.broadcast %24 : vector<2x1x4xf32> to vector<2x8x4xf32>
    %26 = arith.subf %22, %25 : vector<2x8x4xf32>
    %cst_13 = arith.constant dense<0xFF800000> : vector<2x8xf32>
    %27 = vector.multi_reduction <maximumf>, %26, %cst_13 [2] : vector<2x8x4xf32> to vector<2x8xf32>
    %28 = vector.shape_cast %27 : vector<2x8xf32> to vector<2x8x1xf32>
    %29 = vector.broadcast %28 : vector<2x8x1xf32> to vector<2x8x4xf32>
    %30 = arith.subf %26, %29 : vector<2x8x4xf32>
    %c0_14 = arith.constant 0 : index
    %c0_15 = arith.constant 0 : index
    %c0_16 = arith.constant 0 : index
    %31 = vector.load %arg3[%c0_14, %c0_15, %c0_16] : memref<2x8x4xf32, #tpu.memory_space<vmem>>, vector<2x8x4xf32>
    tpu.vector_store %arg3[%c0_14, %c0_15, %c0_16], %30 {strides = array<i32>} : memref<2x8x4xf32, #tpu.memory_space<vmem>>, vector<2x8x4xf32>,
    return
  }
  func.func @transform_0(%arg0: i32) -> (i32, i32, i32) {
    %c0_i32 = arith.constant 0 : i32
    %c0_i32_0 = arith.constant 0 : i32
    %c0_i32_1 = arith.constant 0 : i32
    return %arg0, %c0_i32, %c0_i32_0 : i32, i32, i32
  }
  func.func @transform_1(%arg0: i32) -> (i32, i32, i32) {
    %c0_i32 = arith.constant 0 : i32
    %c0_i32_0 = arith.constant 0 : i32
    %c0_i32_1 = arith.constant 0 : i32
    return %arg0, %c0_i32, %c0_i32_0 : i32, i32, i32
  }
  func.func @transform_2(%arg0: i32) -> (i32, i32, i32) {
    %c0_i32 = arith.constant 0 : i32
    %c0_i32_0 = arith.constant 0 : i32
    %c0_i32_1 = arith.constant 0 : i32
    return %arg0, %c0_i32, %c0_i32_0 : i32, i32, i32
  }
}

</mosaic_0001>

<llo_original>
// kernel: tpu_custom_call.1
$region0: #{tpu_custom_call.1}
  #allocation0 [shape = 'u32[]', space=smem, size = 0x4, offset = 0x4, fixed_abs, tag = 'smem constant byte address 0x4 - core index']
  #allocation1 [shape = 'u32[144,128]{1,0:T(1,128)}', space=vmem, size = 0x12000, scoped, tag = 'internal scratch']
  %s0 = inlined_call_operand.hbm [shape: f32[4,8,128], index: 0, kind: input, shape index: {}]
  %s1 = inlined_call_operand.hbm [shape: f32[4,8,128], index: 1, kind: input, shape index: {}]
  %s2 = inlined_call_operand.vmem [shape: f32[4,8,4], index: 2, kind: output, shape index: {}]
  %s3 = sld [smem:[#allocation0]]
  $region49: #{tpu_custom_call.1} parent=0
    _
  %s5 = ssub.s32 1, %s3
  %s6 = scalar_select 0, %s5, %s3
  $region1: #{tpu_custom_call.1} parent=0
    #allocation2 [shape = 'u8[16384]{0}', space=vmem, size = 0x4000, scoped, tag = 'input window, operand 0']
    #allocation3 [shape = 's32[2]{0}', space=sflag, size = 0x8, scoped, tag = 'scoped memory for tpu_custom_call.1']
    #allocation4 [shape = 'u8[16384]{0}', space=vmem, size = 0x4000, scoped, tag = 'input window, operand 1']
    #allocation5 [shape = 's32[2]{0}', space=sflag, size = 0x8, scoped, tag = 'scoped memory for tpu_custom_call.1']
    %7 = vsyncpa [#allocation3], 0
    %s8 = scalar_lea.sflag [#allocation3], 1
    %9 = vsyncpa %s8, 0
    %10 = vsyncpa [#allocation5], 0
    %s11 = scalar_lea.sflag [#allocation5], 1
    %12 = vsyncpa %s11, 0
    loop: start=0, step=1, limit=4
    $region2: #{tpu_custom_call.1} parent=1 // loop_pre_header
      _
    $region3: #{tpu_custom_call.1} parent=1 // loop_header
      %s14 = sphi 0, %s18
      %p15 = scmp.ge.s32.totalorder %s14, 4
      %s24 = sphi 0, %s26
      %s27 = sphi 0, %s24
      %s28 = sphi 0, %s27
      %s44 = sphi 0, %s28
      %s50 = sphi 0, %s52
      %s53 = sphi 0, %s50
      %s54 = sphi 0, %s53
      %s70 = sphi 0, %s54
      %s76 = sphi 0, %s78
      %s79 = sphi 0, %s76
      %s80 = sphi 0, %s79
      %s96 = sphi 0, %s80
    $region4: #{tpu_custom_call.1} parent=1 // loop_header_branch
      %17 = sbr.rel (%p15) target = $region8
    $region5: #{tpu_custom_call.1} parent=1 // loop_body
      %s19 = ssub.s32 %s14, 1
      %s20 = ssub.s32 %s14, 2
      %s21 = sadd.s32 %s14, 1
      %s22 = ssub.s32 %s14, %s21
      %p23 = scmp.eq.s32.totalorder %s22, 0
      %s25 = sadd.s32 %s24, 1
      %s26 = scalar_select %p23, %s24, %s25
      %p29 = pneg %p23
      %p30 = scmp.eq.s32.totalorder %s14, 1
      %p31 = por %p29, %p30
      %p32 = scmp.ne.s32.totalorder %s24, %s27
      %p33 = scmp.eq.s32.totalorder %s14, 0
      %p34 = por %p32, %p33
      %p35 = scmp.ne.s32.totalorder %s24, %s27
      %p36 = scmp.eq.s32.totalorder %s19, 1
      %p37 = por %p35, %p36
      %p38 = scmp.ne.s32.totalorder %s27, %s28
      %p39 = scmp.eq.s32.totalorder %s19, 0
      %p40 = por %p38, %p39
      %p41 = scmp.ne.s32.totalorder %s27, %s28
      %p42 = scmp.eq.s32.totalorder %s20, 1
      %p43 = por %p41, %p42
      %p45 = scmp.ne.s32.totalorder %s28, %s44
      %p46 = scmp.eq.s32.totalorder %s20, 0
      %p47 = por %p45, %p46
      %s48 = ssub.s32 %s14, %s21
      %p49 = scmp.eq.s32.totalorder %s48, 0
      %s51 = sadd.s32 %s50, 1
      %s52 = scalar_select %p49, %s50, %s51
      %p55 = pneg %p49
      %p56 = scmp.eq.s32.totalorder %s14, 1
      %p57 = por %p55, %p56
      %p58 = scmp.ne.s32.totalorder %s50, %s53
      %p59 = scmp.eq.s32.totalorder %s14, 0
      %p60 = por %p58, %p59
      %p61 = scmp.ne.s32.totalorder %s50, %s53
      %p62 = scmp.eq.s32.totalorder %s19, 1
      %p63 = por %p61, %p62
      %p64 = scmp.ne.s32.totalorder %s53, %s54
      %p65 = scmp.eq.s32.totalorder %s19, 0
      %p66 = por %p64, %p65
      %p67 = scmp.ne.s32.totalorder %s53, %s54
      %p68 = scmp.eq.s32.totalorder %s20, 1
      %p69 = por %p67, %p68
      %p71 = scmp.ne.s32.totalorder %s54, %s70
      %p72 = scmp.eq.s32.totalorder %s20, 0
      %p73 = por %p71, %p72
      %s74 = ssub.s32 %s14, %s21
      %p75 = scmp.eq.s32.totalorder %s74, 0
      %s77 = sadd.s32 %s76, 1
      %s78 = scalar_select %p75, %s76, %s77
      %p81 = pneg %p75
      %p82 = scmp.eq.s32.totalorder %s14, 1
      %p83 = por %p81, %p82
      %p84 = scmp.ne.s32.totalorder %s76, %s79
      %p85 = scmp.eq.s32.totalorder %s14, 0
      %p86 = por %p84, %p85
      %p87 = scmp.ne.s32.totalorder %s76, %s79
      %p88 = scmp.eq.s32.totalorder %s19, 1
      %p89 = por %p87, %p88
      %p90 = scmp.ne.s32.totalorder %s79, %s80
      %p91 = scmp.eq.s32.totalorder %s19, 0
      %p92 = por %p90, %p91
      %p93 = scmp.ne.s32.totalorder %s79, %s80
      %p94 = scmp.eq.s32.totalorder %s20, 1
      %p95 = por %p93, %p94
      %p97 = scmp.ne.s32.totalorder %s80, %s96
      %p98 = scmp.eq.s32.totalorder %s20, 0
      %p99 = por %p97, %p98
      %p100 = scmp.le.s32.totalorder 1, %s14
      %p101 = scmp.lt.s32.totalorder %s14, 3
      %p102 = pnand %p100, %p101
      %p103 = pneg %p102
      // Predicated region
      $region9: #{tpu_custom_call.1} parent=5 // pred_check
        _
      $region10: #{tpu_custom_call.1} parent=5 // pred_check_branch
        %105 = sbr.rel (%p102) target = $region12
      $region11: #{tpu_custom_call.1} parent=5 // pred_region
        %s106 = ssub.s32 %s14, 1
      $region12: #{tpu_custom_call.1} parent=5 // pred_fallthru
        _
      %p107 = scmp.lt.s32.totalorder %s14, 2
      // Predicated region
      $region13: #{tpu_custom_call.1} parent=5 // pred_check
        %p108 = pneg %p107
      $region14: #{tpu_custom_call.1} parent=5 // pred_check_branch
        %110 = sbr.rel (%p108) target = $region16
      $region15: #{tpu_custom_call.1} parent=5 // pred_region
        // Predicated region
        $region17: #{tpu_custom_call.1} parent=15 // pred_check
          %p111 = pneg %p34
        $region18: #{tpu_custom_call.1} parent=15 // pred_check_branch
          %113 = sbr.rel (%p111) target = $region20
        $region19: #{tpu_custom_call.1} parent=15 // pred_region
          %s114 = sand.u32 %s24, 1
          %s115 = scalar_lea.sflag [#allocation3], %s114
          %s116 = sand.u32 %s24, 1
          %s117 = smul.addr %s116, 16
          %s118 = scalar_lea.vmem [#allocation2], %s117
          %s119 = smul.u32 2, %s14
          %s121 = ssub.s32 256, 256
          %122 = vsyncadd %s115, %s121
          %s123 = smul.addr %s119, 128
          %s124 = scalar_lea.hbm %s0, %s123
          %s125 = sshll.u32 %s118, 4
          %s126 = int_to_ptr.vmem [resolvable:$true] %s125
          %131 = dma.hbm_to_vmem [thread:$0]  %s124, 256, %s126, %s115, 128, 128, 8
        $region20: #{tpu_custom_call.1} parent=15 // pred_fallthru
          _
        // Predicated region
        $region21: #{tpu_custom_call.1} parent=15 // pred_check
          %p132 = pneg %p60
        $region22: #{tpu_custom_call.1} parent=15 // pred_check_branch
          %134 = sbr.rel (%p132) target = $region24
        $region23: #{tpu_custom_call.1} parent=15 // pred_region
          %s135 = sand.u32 %s50, 1
          %s136 = scalar_lea.sflag [#allocation5], %s135
          %s137 = sand.u32 %s50, 1
          %s138 = smul.addr %s137, 16
          %s139 = scalar_lea.vmem [#allocation4], %s138
          %s140 = smul.u32 2, %s14
          %s142 = ssub.s32 256, 256
          %143 = vsyncadd %s136, %s142
          %s144 = smul.addr %s140, 128
          %s145 = scalar_lea.hbm %s1, %s144
          %s146 = sshll.u32 %s139, 4
          %s147 = int_to_ptr.vmem [resolvable:$true] %s146
          %152 = dma.hbm_to_vmem [thread:$0]  %s145, 256, %s147, %s136, 128, 128, 8
        $region24: #{tpu_custom_call.1} parent=15 // pred_fallthru
          _
      $region16: #{tpu_custom_call.1} parent=5 // pred_fallthru
        _
      %p153 = scmp.le.s32.totalorder 1, %s14
      %p154 = scmp.lt.s32.totalorder %s14, 3
      %p155 = pnand %p153, %p154
      %p156 = pneg %p155
      // Predicated region
      $region25: #{tpu_custom_call.1} parent=5 // pred_check
        _
      $region26: #{tpu_custom_call.1} parent=5 // pred_check_branch
        %158 = sbr.rel (%p155) target = $region28
      $region27: #{tpu_custom_call.1} parent=5 // pred_region
        %s159 = ssub.s32 %s14, 1
        %s160 = sand.u32 %s27, 1
        %s161 = scalar_lea.sflag [#allocation3], %s160
        %s162 = sand.u32 %s27, 1
        %s163 = smul.addr %s162, 16
        %s164 = scalar_lea.vmem [#allocation2], %s163
        // Predicated region
        $region29: #{tpu_custom_call.1} parent=27 // pred_check
          %p165 = pneg %p40
        $region30: #{tpu_custom_call.1} parent=27 // pred_check_branch
          %167 = sbr.rel (%p165) target = $region32
        $region31: #{tpu_custom_call.1} parent=27 // pred_region
          %168 = dma.done %s161, 256
        $region32: #{tpu_custom_call.1} parent=27 // pred_fallthru
          _
        %s169 = sand.u32 %s53, 1
        %s170 = scalar_lea.sflag [#allocation5], %s169
        %s171 = sand.u32 %s53, 1
        %s172 = smul.addr %s171, 16
        %s173 = scalar_lea.vmem [#allocation4], %s172
        // Predicated region
        $region33: #{tpu_custom_call.1} parent=27 // pred_check
          %p174 = pneg %p66
        $region34: #{tpu_custom_call.1} parent=27 // pred_check_branch
          %176 = sbr.rel (%p174) target = $region36
        $region35: #{tpu_custom_call.1} parent=27 // pred_region
          %177 = dma.done %s170, 256
        $region36: #{tpu_custom_call.1} parent=27 // pred_fallthru
          _
        %s178 = sand.u32 %s27, 1
        %s179 = scalar_lea.sflag [#allocation3], %s178
        %s180 = sand.u32 %s27, 1
        %s181 = smul.addr %s180, 16
        %s182 = scalar_lea.vmem [#allocation2], %s181
        %p183 = pneg %p40
        %p184 = pneg %p37
        %s185 = sand.u32 %s53, 1
        %s186 = scalar_lea.sflag [#allocation5], %s185
        %s187 = sand.u32 %s53, 1
        %s188 = smul.addr %s187, 16
        %s189 = scalar_lea.vmem [#allocation4], %s188
        %p190 = pneg %p66
        %p191 = pneg %p63
        %p192 = pneg %p92
        %p193 = pneg %p89
        %s194 = smul.u32 2, %s19
        %p195 = scmp.lt.s32.totalorder %s194, 3
        %s196 = scalar_select %p195, %s194, 3
        %s197 = smul.addr %s196, 8
        %s198 = scalar_lea.vmem %s2, %s197
        %s199 = smul.u32 2, %s19
        %s200 = smul.u32 2, %s19
        %s201 = smul.u32 2, %s19
        %p202 = scmp.lt.s32.totalorder %s201, 3
        %s203 = scalar_select %p202, %s201, 3
        %s204 = smul.addr %s203, 8
        %s205 = scalar_lea.vmem %s2, %s204
        %s206 = smul.u32 2, %s19
        %v207 = vld [vmem:[%s164] sm:$0xff]
        %v208 = vld [vmem:[%s164 + $0x8] sm:$0xff]
        %v209 = vld [vmem:[%s173] sm:$0xff]
        %v210 = vld [vmem:[%s173 + $0x8] sm:$0xff]
        %v211 = vlaneseq
        %v212 = vshrl.u32 %v211, 7
        %v213 = vlaneseq
        %v214 = vand.u32 %v213, 127
        %v215 = vmul.u32 %v212, 2
        %vm216 = vcmp.ge.s32.totalorder %v214, %v215
        %v217 = vadd.s32 %v215, 2
        %vm218 = vcmp.lt.s32.totalorder %v214, %v217
        %vm219 = vmand %vm216, %vm218
        %v220 = vsel %vm219, 1.0, 0.0
        %vm221 = vcmask 64512
        %v223 = vsel %vm221, %v220, 0
        %225 = vmatprep.subr.mxu0 0.0
        %226 = vmatpush1.msra.mxu0 %v207
        %227 = vmatprep.subr.mxu0 0.0
        %228 = vmatpush1.msra.mxu0 0.0
        %229 = vmatprep.subr.mxu0 0.0
        %230 = vmatpush1.msra.mxu0 0.0
        %231 = vmatprep.subr.mxu0 0.0
        %232 = vmatpush1.msra.mxu0 0.0
        %233 = vmatprep.subr.mxu0 0.0
        %234 = vmatpush1.msra.mxu0 0.0
        %235 = vmatprep.subr.mxu0 0.0
        %236 = vmatpush1.msra.mxu0 0.0
        %237 = vmatprep.subr.mxu0 0.0
        %238 = vmatpush1.msra.mxu0 0.0
        %239 = vmatprep.subr.mxu0 0.0
        %240 = vmatpush1.msra.mxu0 0.0
        %241 = vmatprep.subr.mxu0 0.0
        %242 = vmatpush1.msra.mxu0 0.0
        %243 = vmatprep.subr.mxu0 0.0
        %244 = vmatpush1.msra.mxu0 0.0
        %245 = vmatprep.subr.mxu0 0.0
        %246 = vmatpush1.msra.mxu0 0.0
        %247 = vmatprep.subr.mxu0 0.0
        %248 = vmatpush1.msra.mxu0 0.0
        %249 = vmatprep.subr.mxu0 0.0
        %250 = vmatpush1.msra.mxu0 0.0
        %251 = vmatprep.subr.mxu0 0.0
        %252 = vmatpush1.msra.mxu0 0.0
        %253 = vmatprep.subr.mxu0 0.0
        %254 = vmatpush1.msra.mxu0 0.0
        %255 = vmatprep.subr.mxu0 0.0
        %256 = vmatpush1.msra.mxu0 0.0
        %257 = vmatprep.subr.mxu0 0.0
        %258 = vmatpush1.msra.mxu0 0.0
        %259 = vmatprep.subr.mxu0 0.0
        %260 = vmatpush1.msra.mxu0 0.0
        %261 = vmatprep.subr.mxu0 0.0
        %262 = vmatpush1.msra.mxu0 0.0
        %263 = vmatprep.subr.mxu0 0.0
        %264 = vmatpush1.msra.mxu0 0.0
        %265 = vmatprep.subr.mxu0 0.0
        %266 = vmatpush1.msra.mxu0 0.0
        %267 = vmatprep.subr.mxu0 0.0
        %268 = vmatpush1.msra.mxu0 0.0
        %269 = vmatprep.subr.mxu0 0.0
        %270 = vmatpush1.msra.mxu0 0.0
        %271 = vmatprep.subr.mxu0 0.0
        %272 = vmatpush1.msra.mxu0 0.0
        %273 = vmatprep.subr.mxu0 0.0
        %274 = vmatpush1.msra.mxu0 0.0
        %275 = vmatprep.subr.mxu0 0.0
        %276 = vmatpush1.msra.mxu0 0.0
        %277 = vmatprep.subr.mxu0 0.0
        %278 = vmatpush1.msra.mxu0 0.0
        %279 = vmatprep.subr.mxu0 0.0
        %280 = vmatpush1.msra.mxu0 0.0
        %281 = vmatprep.subr.mxu0 0.0
        %282 = vmatpush1.msra.mxu0 0.0
        %283 = vmatprep.subr.mxu0 0.0
        %284 = vmatpush1.msra.mxu0 0.0
        %285 = vmatprep.subr.mxu0 0.0
        %286 = vmatpush1.msra.mxu0 0.0
        %287 = vmatprep.subr.mxu0 0.0
        %288 = vmatpush1.msra.mxu0 0.0
        %289 = vmatprep.mubr.f32.mxu0 0.0
        %290 = vmatmul.mubr.f32.gmra.mrb[0].mxu0 %v223
        %v291 = vpop.f32.mrb[0].mxu0
        %v292 = vadd.f32 0.0, %v291
        %v293 = vpop.f32.mrb[0].mxu0
        %294 = vdwg.mxu0
        %295 = vmatprep.subr.mxu0 0.0
        %296 = vmatpush1.msra.mxu0 %v208
        %297 = vmatprep.subr.mxu0 0.0
        %298 = vmatpush1.msra.mxu0 0.0
        %299 = vmatprep.subr.mxu0 0.0
        %300 = vmatpush1.msra.mxu0 0.0
        %301 = vmatprep.subr.mxu0 0.0
        %302 = vmatpush1.msra.mxu0 0.0
        %303 = vmatprep.subr.mxu0 0.0
        %304 = vmatpush1.msra.mxu0 0.0
        %305 = vmatprep.subr.mxu0 0.0
        %306 = vmatpush1.msra.mxu0 0.0
        %307 = vmatprep.subr.mxu0 0.0
        %308 = vmatpush1.msra.mxu0 0.0
        %309 = vmatprep.subr.mxu0 0.0
        %310 = vmatpush1.msra.mxu0 0.0
        %311 = vmatprep.subr.mxu0 0.0
        %312 = vmatpush1.msra.mxu0 0.0
        %313 = vmatprep.subr.mxu0 0.0
        %314 = vmatpush1.msra.mxu0 0.0
        %315 = vmatprep.subr.mxu0 0.0
        %316 = vmatpush1.msra.mxu0 0.0
        %317 = vmatprep.subr.mxu0 0.0
        %318 = vmatpush1.msra.mxu0 0.0
        %319 = vmatprep.subr.mxu0 0.0
        %320 = vmatpush1.msra.mxu0 0.0
        %321 = vmatprep.subr.mxu0 0.0
        %322 = vmatpush1.msra.mxu0 0.0
        %323 = vmatprep.subr.mxu0 0.0
        %324 = vmatpush1.msra.mxu0 0.0
        %325 = vmatprep.subr.mxu0 0.0
        %326 = vmatpush1.msra.mxu0 0.0
        %327 = vmatprep.subr.mxu0 0.0
        %328 = vmatpush1.msra.mxu0 0.0
        %329 = vmatprep.subr.mxu0 0.0
        %330 = vmatpush1.msra.mxu0 0.0
        %331 = vmatprep.subr.mxu0 0.0
        %332 = vmatpush1.msra.mxu0 0.0
        %333 = vmatprep.subr.mxu0 0.0
        %334 = vmatpush1.msra.mxu0 0.0
        %335 = vmatprep.subr.mxu0 0.0
        %336 = vmatpush1.msra.mxu0 0.0
        %337 = vmatprep.subr.mxu0 0.0
        %338 = vmatpush1.msra.mxu0 0.0
        %339 = vmatprep.subr.mxu0 0.0
        %340 = vmatpush1.msra.mxu0 0.0
        %341 = vmatprep.subr.mxu0 0.0
        %342 = vmatpush1.msra.mxu0 0.0
        %343 = vmatprep.subr.mxu0 0.0
        %344 = vmatpush1.msra.mxu0 0.0
        %345 = vmatprep.subr.mxu0 0.0
        %346 = vmatpush1.msra.mxu0 0.0
        %347 = vmatprep.subr.mxu0 0.0
        %348 = vmatpush1.msra.mxu0 0.0
        %349 = vmatprep.subr.mxu0 0.0
        %350 = vmatpush1.msra.mxu0 0.0
        %351 = vmatprep.subr.mxu0 0.0
        %352 = vmatpush1.msra.mxu0 0.0
        %353 = vmatprep.subr.mxu0 0.0
        %354 = vmatpush1.msra.mxu0 0.0
        %355 = vmatprep.subr.mxu0 0.0
        %356 = vmatpush1.msra.mxu0 0.0
        %357 = vmatprep.subr.mxu0 0.0
        %358 = vmatpush1.msra.mxu0 0.0
        %359 = vmatprep.mubr.f32.mxu0 0.0
        %360 = vmatmul.mubr.f32.gmra.mrb[0].mxu0 %v223
        %v361 = vpop.f32.mrb[0].mxu0
        %v362 = vadd.f32 0.0, %v361
        %v363 = vpop.f32.mrb[0].mxu0
        %364 = vdwg.mxu0
        %365 = vmatprep.subr.mxu0 0.0
        %366 = vmatpush1.xpose.msra.mxu0 %v292
        %367 = vmatprep.subr.mxu0 0.0
        %368 = vmatpush1.xpose.msra.mxu0 0.0
        %369 = vmatprep.subr.mxu0 0.0
        %370 = vmatpush1.xpose.msra.mxu0 0.0
        %371 = vmatprep.subr.mxu0 0.0
        %372 = vmatpush1.xpose.msra.mxu0 0.0
        %373 = vmatprep.subr.mxu0 0.0
        %374 = vmatpush1.xpose.msra.mxu0 0.0
        %375 = vmatprep.subr.mxu0 0.0
        %376 = vmatpush1.xpose.msra.mxu0 0.0
        %377 = vmatprep.subr.mxu0 0.0
        %378 = vmatpush1.xpose.msra.mxu0 0.0
        %379 = vmatprep.subr.mxu0 0.0
        %380 = vmatpush1.xpose.msra.mxu0 0.0
        %381 = vmatprep.subr.mxu0 0.0
        %382 = vmatpush1.xpose.msra.mxu0 0.0
        %383 = vmatprep.subr.mxu0 0.0
        %384 = vmatpush1.xpose.msra.mxu0 0.0
        %385 = vmatprep.subr.mxu0 0.0
        %386 = vmatpush1.xpose.msra.mxu0 0.0
        %387 = vmatprep.subr.mxu0 0.0
        %388 = vmatpush1.xpose.msra.mxu0 0.0
        %389 = vmatprep.subr.mxu0 0.0
        %390 = vmatpush1.xpose.msra.mxu0 0.0
        %391 = vmatprep.subr.mxu0 0.0
        %392 = vmatpush1.xpose.msra.mxu0 0.0
        %393 = vmatprep.subr.mxu0 0.0
        %394 = vmatpush1.xpose.msra.mxu0 0.0
        %395 = vmatprep.subr.mxu0 0.0
        %396 = vmatpush1.xpose.msra.mxu0 0.0
        %397 = vmatprep.subr.mxu0 0.0
        %398 = vmatpush1.xpose.msra.mxu0 0.0
        %399 = vmatprep.subr.mxu0 0.0
        %400 = vmatpush1.xpose.msra.mxu0 0.0
        %401 = vmatprep.subr.mxu0 0.0
        %402 = vmatpush1.xpose.msra.mxu0 0.0
        %403 = vmatprep.subr.mxu0 0.0
        %404 = vmatpush1.xpose.msra.mxu0 0.0
        %405 = vmatprep.subr.mxu0 0.0
        %406 = vmatpush1.xpose.msra.mxu0 0.0
        %407 = vmatprep.subr.mxu0 0.0
        %408 = vmatpush1.xpose.msra.mxu0 0.0
        %409 = vmatprep.subr.mxu0 0.0
        %410 = vmatpush1.xpose.msra.mxu0 0.0
        %411 = vmatprep.subr.mxu0 0.0
        %412 = vmatpush1.xpose.msra.mxu0 0.0
        %413 = vmatprep.subr.mxu0 0.0
        %414 = vmatpush1.xpose.msra.mxu0 0.0
        %415 = vmatprep.subr.mxu0 0.0
        %416 = vmatpush1.xpose.msra.mxu0 0.0
        %417 = vmatprep.subr.mxu0 0.0
        %418 = vmatpush1.xpose.msra.mxu0 0.0
        %419 = vmatprep.subr.mxu0 0.0
        %420 = vmatpush1.xpose.msra.mxu0 0.0
        %421 = vmatprep.subr.mxu0 0.0
        %422 = vmatpush1.xpose.msra.mxu0 0.0
        %423 = vmatprep.subr.mxu0 0.0
        %424 = vmatpush1.xpose.msra.mxu0 0.0
        %425 = vmatprep.subr.mxu0 0.0
        %426 = vmatpush1.xpose.msra.mxu0 0.0
        %427 = vmatprep.subr.mxu0 0.0
        %428 = vmatpush1.xpose.msra.mxu0 0.0
        %429 = vmatprep.mubr.f32.mxu0 0.0
        %430 = vmatmul.mubr.f32.gmra.mrb[0].mxu0 %v209
        %v431 = vpop.f32.mrb[0].mxu0
        %v432 = vadd.f32 0.0, %v431
        %v433 = vpop.f32.mrb[0].mxu0
        %434 = vdwg.mxu0
        %435 = vmatprep.subr.mxu0 0.0
        %436 = vmatpush1.xpose.msra.mxu0 %v362
        %437 = vmatprep.subr.mxu0 0.0
        %438 = vmatpush1.xpose.msra.mxu0 0.0
        %439 = vmatprep.subr.mxu0 0.0
        %440 = vmatpush1.xpose.msra.mxu0 0.0
        %441 = vmatprep.subr.mxu0 0.0
        %442 = vmatpush1.xpose.msra.mxu0 0.0
        %443 = vmatprep.subr.mxu0 0.0
        %444 = vmatpush1.xpose.msra.mxu0 0.0
        %445 = vmatprep.subr.mxu0 0.0
        %446 = vmatpush1.xpose.msra.mxu0 0.0
        %447 = vmatprep.subr.mxu0 0.0
        %448 = vmatpush1.xpose.msra.mxu0 0.0
        %449 = vmatprep.subr.mxu0 0.0
        %450 = vmatpush1.xpose.msra.mxu0 0.0
        %451 = vmatprep.subr.mxu0 0.0
        %452 = vmatpush1.xpose.msra.mxu0 0.0
        %453 = vmatprep.subr.mxu0 0.0
        %454 = vmatpush1.xpose.msra.mxu0 0.0
        %455 = vmatprep.subr.mxu0 0.0
        %456 = vmatpush1.xpose.msra.mxu0 0.0
        %457 = vmatprep.subr.mxu0 0.0
        %458 = vmatpush1.xpose.msra.mxu0 0.0
        %459 = vmatprep.subr.mxu0 0.0
        %460 = vmatpush1.xpose.msra.mxu0 0.0
        %461 = vmatprep.subr.mxu0 0.0
        %462 = vmatpush1.xpose.msra.mxu0 0.0
        %463 = vmatprep.subr.mxu0 0.0
        %464 = vmatpush1.xpose.msra.mxu0 0.0
        %465 = vmatprep.subr.mxu0 0.0
        %466 = vmatpush1.xpose.msra.mxu0 0.0
        %467 = vmatprep.subr.mxu0 0.0
        %468 = vmatpush1.xpose.msra.mxu0 0.0
        %469 = vmatprep.subr.mxu0 0.0
        %470 = vmatpush1.xpose.msra.mxu0 0.0
        %471 = vmatprep.subr.mxu0 0.0
        %472 = vmatpush1.xpose.msra.mxu0 0.0
        %473 = vmatprep.subr.mxu0 0.0
        %474 = vmatpush1.xpose.msra.mxu0 0.0
        %475 = vmatprep.subr.mxu0 0.0
        %476 = vmatpush1.xpose.msra.mxu0 0.0
        %477 = vmatprep.subr.mxu0 0.0
        %478 = vmatpush1.xpose.msra.mxu0 0.0
        %479 = vmatprep.subr.mxu0 0.0
        %480 = vmatpush1.xpose.msra.mxu0 0.0
        %481 = vmatprep.subr.mxu0 0.0
        %482 = vmatpush1.xpose.msra.mxu0 0.0
        %483 = vmatprep.subr.mxu0 0.0
        %484 = vmatpush1.xpose.msra.mxu0 0.0
        %485 = vmatprep.subr.mxu0 0.0
        %486 = vmatpush1.xpose.msra.mxu0 0.0
        %487 = vmatprep.subr.mxu0 0.0
        %488 = vmatpush1.xpose.msra.mxu0 0.0
        %489 = vmatprep.subr.mxu0 0.0
        %490 = vmatpush1.xpose.msra.mxu0 0.0
        %491 = vmatprep.subr.mxu0 0.0
        %492 = vmatpush1.xpose.msra.mxu0 0.0
        %493 = vmatprep.subr.mxu0 0.0
        %494 = vmatpush1.xpose.msra.mxu0 0.0
        %495 = vmatprep.subr.mxu0 0.0
        %496 = vmatpush1.xpose.msra.mxu0 0.0
        %497 = vmatprep.subr.mxu0 0.0
        %498 = vmatpush1.xpose.msra.mxu0 0.0
        %499 = vmatprep.mubr.f32.mxu0 0.0
        %500 = vmatmul.mubr.f32.gmra.mrb[0].mxu0 %v210
        %v501 = vpop.f32.mrb[0].mxu0
        %v502 = vadd.f32 0.0, %v501
        %v503 = vpop.f32.mrb[0].mxu0
        %504 = vdwg.mxu0
        %v505 = vmul.f32 %v292, %v292
        %v506 = vmul.f32 %v362, %v362
        %507 = vmatprep.subr.mxu0 0.0
        %508 = vmatpush1.xpose.msra.mxu0 %v505
        %509 = vmatprep.subr.mxu0 0.0
        %510 = vmatpush1.xpose.msra.mxu0 0.0
        %511 = vmatprep.subr.mxu0 0.0
        %512 = vmatpush1.xpose.msra.mxu0 0.0
        %513 = vmatprep.subr.mxu0 0.0
        %514 = vmatpush1.xpose.msra.mxu0 0.0
        %515 = vmatprep.subr.mxu0 0.0
        %516 = vmatpush1.xpose.msra.mxu0 0.0
        %517 = vmatprep.subr.mxu0 0.0
        %518 = vmatpush1.xpose.msra.mxu0 0.0
        %519 = vmatprep.subr.mxu0 0.0
        %520 = vmatpush1.xpose.msra.mxu0 0.0
        %521 = vmatprep.subr.mxu0 0.0
        %522 = vmatpush1.xpose.msra.mxu0 0.0
        %523 = vmatprep.subr.mxu0 0.0
        %524 = vmatpush1.xpose.msra.mxu0 0.0
        %525 = vmatprep.subr.mxu0 0.0
        %526 = vmatpush1.xpose.msra.mxu0 0.0
        %527 = vmatprep.subr.mxu0 0.0
        %528 = vmatpush1.xpose.msra.mxu0 0.0
        %529 = vmatprep.subr.mxu0 0.0
        %530 = vmatpush1.xpose.msra.mxu0 0.0
        %531 = vmatprep.subr.mxu0 0.0
        %532 = vmatpush1.xpose.msra.mxu0 0.0
        %533 = vmatprep.subr.mxu0 0.0
        %534 = vmatpush1.xpose.msra.mxu0 0.0
        %535 = vmatprep.subr.mxu0 0.0
        %536 = vmatpush1.xpose.msra.mxu0 0.0
        %537 = vmatprep.subr.mxu0 0.0
        %538 = vmatpush1.xpose.msra.mxu0 0.0
        %539 = vmatprep.subr.mxu0 0.0
        %540 = vmatpush1.xpose.msra.mxu0 0.0
        %541 = vmatprep.subr.mxu0 0.0
        %542 = vmatpush1.xpose.msra.mxu0 0.0
        %543 = vmatprep.subr.mxu0 0.0
        %544 = vmatpush1.xpose.msra.mxu0 0.0
        %545 = vmatprep.subr.mxu0 0.0
        %546 = vmatpush1.xpose.msra.mxu0 0.0
        %547 = vmatprep.subr.mxu0 0.0
        %548 = vmatpush1.xpose.msra.mxu0 0.0
        %549 = vmatprep.subr.mxu0 0.0
        %550 = vmatpush1.xpose.msra.mxu0 0.0
        %551 = vmatprep.subr.mxu0 0.0
        %552 = vmatpush1.xpose.msra.mxu0 0.0
        %553 = vmatprep.subr.mxu0 0.0
        %554 = vmatpush1.xpose.msra.mxu0 0.0
        %555 = vmatprep.subr.mxu0 0.0
        %556 = vmatpush1.xpose.msra.mxu0 0.0
        %557 = vmatprep.subr.mxu0 0.0
        %558 = vmatpush1.xpose.msra.mxu0 0.0
        %559 = vmatprep.subr.mxu0 0.0
        %560 = vmatpush1.xpose.msra.mxu0 0.0
        %561 = vmatprep.subr.mxu0 0.0
        %562 = vmatpush1.xpose.msra.mxu0 0.0
        %563 = vmatprep.subr.mxu0 0.0
        %564 = vmatpush1.xpose.msra.mxu0 0.0
        %565 = vmatprep.subr.mxu0 0.0
        %566 = vmatpush1.xpose.msra.mxu0 0.0
        %567 = vmatprep.subr.mxu0 0.0
        %568 = vmatpush1.xpose.msra.mxu0 0.0
        %569 = vmatprep.subr.mxu0 0.0
        %570 = vmatpush1.xpose.msra.mxu0 0.0
        %571 = vmatprep.mubr.f32.mxu0 0.0
        %572 = vmatmul.mubr.f32.gmra.mrb[0].mxu0 1.0
        %v573 = vpop.f32.mrb[0].mxu0
        %v574 = vadd.f32 0.0, %v573
        %v575 = vpop.f32.mrb[0].mxu0
        %576 = vdwg.mxu0
        %577 = vmatprep.subr.mxu0 0.0
        %578 = vmatpush1.xpose.msra.mxu0 %v506
        %579 = vmatprep.subr.mxu0 0.0
        %580 = vmatpush1.xpose.msra.mxu0 0.0
        %581 = vmatprep.subr.mxu0 0.0
        %582 = vmatpush1.xpose.msra.mxu0 0.0
        %583 = vmatprep.subr.mxu0 0.0
        %584 = vmatpush1.xpose.msra.mxu0 0.0
        %585 = vmatprep.subr.mxu0 0.0
        %586 = vmatpush1.xpose.msra.mxu0 0.0
        %587 = vmatprep.subr.mxu0 0.0
        %588 = vmatpush1.xpose.msra.mxu0 0.0
        %589 = vmatprep.subr.mxu0 0.0
        %590 = vmatpush1.xpose.msra.mxu0 0.0
        %591 = vmatprep.subr.mxu0 0.0
        %592 = vmatpush1.xpose.msra.mxu0 0.0
        %593 = vmatprep.subr.mxu0 0.0
        %594 = vmatpush1.xpose.msra.mxu0 0.0
        %595 = vmatprep.subr.mxu0 0.0
        %596 = vmatpush1.xpose.msra.mxu0 0.0
        %597 = vmatprep.subr.mxu0 0.0
        %598 = vmatpush1.xpose.msra.mxu0 0.0
        %599 = vmatprep.subr.mxu0 0.0
        %600 = vmatpush1.xpose.msra.mxu0 0.0
        %601 = vmatprep.subr.mxu0 0.0
        %602 = vmatpush1.xpose.msra.mxu0 0.0
        %603 = vmatprep.subr.mxu0 0.0
        %604 = vmatpush1.xpose.msra.mxu0 0.0
        %605 = vmatprep.subr.mxu0 0.0
        %606 = vmatpush1.xpose.msra.mxu0 0.0
        %607 = vmatprep.subr.mxu0 0.0
        %608 = vmatpush1.xpose.msra.mxu0 0.0
        %609 = vmatprep.subr.mxu0 0.0
        %610 = vmatpush1.xpose.msra.mxu0 0.0
        %611 = vmatprep.subr.mxu0 0.0
        %612 = vmatpush1.xpose.msra.mxu0 0.0
        %613 = vmatprep.subr.mxu0 0.0
        %614 = vmatpush1.xpose.msra.mxu0 0.0
        %615 = vmatprep.subr.mxu0 0.0
        %616 = vmatpush1.xpose.msra.mxu0 0.0
        %617 = vmatprep.subr.mxu0 0.0
        %618 = vmatpush1.xpose.msra.mxu0 0.0
        %619 = vmatprep.subr.mxu0 0.0
        %620 = vmatpush1.xpose.msra.mxu0 0.0
        %621 = vmatprep.subr.mxu0 0.0
        %622 = vmatpush1.xpose.msra.mxu0 0.0
        %623 = vmatprep.subr.mxu0 0.0
        %624 = vmatpush1.xpose.msra.mxu0 0.0
        %625 = vmatprep.subr.mxu0 0.0
        %626 = vmatpush1.xpose.msra.mxu0 0.0
        %627 = vmatprep.subr.mxu0 0.0
        %628 = vmatpush1.xpose.msra.mxu0 0.0
        %629 = vmatprep.subr.mxu0 0.0
        %630 = vmatpush1.xpose.msra.mxu0 0.0
        %631 = vmatprep.subr.mxu0 0.0
        %632 = vmatpush1.xpose.msra.mxu0 0.0
        %633 = vmatprep.subr.mxu0 0.0
        %634 = vmatpush1.xpose.msra.mxu0 0.0
        %635 = vmatprep.subr.mxu0 0.0
        %636 = vmatpush1.xpose.msra.mxu0 0.0
        %637 = vmatprep.subr.mxu0 0.0
        %638 = vmatpush1.xpose.msra.mxu0 0.0
        %639 = vmatprep.subr.mxu0 0.0
        %640 = vmatpush1.xpose.msra.mxu0 0.0
        %641 = vmatprep.mubr.f32.mxu0 0.0
        %642 = vmatmul.mubr.f32.gmra.mrb[0].mxu0 1.0
        %v643 = vpop.f32.mrb[0].mxu0
        %v644 = vadd.f32 0.0, %v643
        %v645 = vpop.f32.mrb[0].mxu0
        %646 = vdwg.mxu0
        %v647 = vmul.f32 %v432, 0.0078125
        %v648 = vmul.f32 %v502, 0.0078125
        %v649 = vmul.f32 %v574, 0.001953125
        %v650 = vmul.f32 %v644, 0.001953125
        %v651 = vlaneseq
        %v652 = vshrl.u32 %v651, 7
        %v653 = vsub.s32 0, %v652
        %v654 = vrot.slane %v649, %v653
        %v655 = vlaneseq
        %v656 = vshrl.u32 %v655, 7
        %v657 = vsub.s32 0, %v656
        %v658 = vrot.slane %v650, %v657
        %v659 = vsub.f32 %v647, %v654
        %v660 = vsub.f32 %v648, %v658
        %vm661 = vcmask 31744
        %v662 = vsel %vm661, %v659, -inf
        %663 = vmax.xlane.f32.xlu0 %v662
        %v664 = vpop.xlane.xlu0 %663
        %v665 = vsel %vm661, %v660, -inf
        %666 = vmax.xlane.f32.xlu0 %v665
        %v667 = vpop.xlane.xlu0 %666
        %v668 = vsub.f32 %v659, %v664
        %v669 = vsub.f32 %v660, %v667
        %670 = vst.msk [vmem:[%s205] sm:$0xff] %vm661, %v668
        %671 = vst.msk [vmem:[%s205 + $0x8] sm:$0xff] %vm661, %v669
        %s672 = smul.u32 2, %s19
        %p673 = scmp.lt.s32.totalorder %s672, 3
        %s674 = scalar_select %p673, %s672, 3
        %s675 = smul.addr %s674, 8
        %s676 = scalar_lea.vmem %s2, %s675
        // Predicated region
        $region37: #{tpu_custom_call.1} parent=27 // pred_check
          %p677 = pneg %p89
        $region38: #{tpu_custom_call.1} parent=27 // pred_check_branch
          %679 = sbr.rel (%p677) target = $region40
        $region39: #{tpu_custom_call.1} parent=27 // pred_region
          %s680 = smul.u32 2, %s19
        $region40: #{tpu_custom_call.1} parent=27 // pred_fallthru
          _
      $region28: #{tpu_custom_call.1} parent=5 // pred_fallthru
        _
      %p681 = scmp.le.s32.totalorder 2, %s14
      // Predicated region
      $region41: #{tpu_custom_call.1} parent=5 // pred_check
        %p682 = pneg %p681
      $region42: #{tpu_custom_call.1} parent=5 // pred_check_branch
        %684 = sbr.rel (%p682) target = $region44
      $region43: #{tpu_custom_call.1} parent=5 // pred_region
        %s685 = ssub.s32 %s14, 2
        // Predicated region
        $region45: #{tpu_custom_call.1} parent=43 // pred_check
          %p686 = pneg %p95
        $region46: #{tpu_custom_call.1} parent=43 // pred_check_branch
          %688 = sbr.rel (%p686) target = $region48
        $region47: #{tpu_custom_call.1} parent=43 // pred_region
          %s689 = smul.u32 2, %s20
          %p690 = scmp.lt.s32.totalorder %s689, 3
          %s691 = scalar_select %p690, %s689, 3
          %s692 = smul.addr %s691, 8
          %s693 = scalar_lea.vmem %s2, %s692
        $region48: #{tpu_custom_call.1} parent=43 // pred_fallthru
          _
      $region44: #{tpu_custom_call.1} parent=5 // pred_fallthru
        _
    $region6: #{tpu_custom_call.1} parent=1 // loop_footer
      %s18 = sadd.s32 1, %s14
    $region7: #{tpu_custom_call.1} parent=1 // loop_footer_branch
      %13 = sbr.rel target = $region3
    $region8: #{tpu_custom_call.1} parent=1 // loop_exit
      _
    %694 = vsyncpa [#allocation3], 1
    %s695 = scalar_lea.sflag [#allocation3], 1
    %696 = vsyncpa %s695, 1
    %697 = vsyncpa [#allocation5], 1
    %s698 = scalar_lea.sflag [#allocation5], 1
    %699 = vsyncpa %s698, 1

</llo_original>
